<compile_context>
chip_gen: v6e
topology: v6e:2x2x1
jax: 0.10.0
libtpu: 0.0.40
codegen_flags: <defaults>
</compile_context>

<pallas_src>
import functools

import jax
import jax.numpy as jnp
from jax.experimental import pallas as pl
from jax.experimental.pallas import tpu as pltpu


def _round_up(n, m):
    return ((n + m - 1) // m) * m


def torso_kernel(x_ref, w1_ref, b1_ref, w2_ref, b2_ref, o_ref):
    # x_ref : (TB, D)   f32    current batch tile (D = input_dim, e.g. 65)
    # w1_ref: (D, H)    bf16   full weight 1, [in, out] layout, resident
    # b1_ref: (1, H)    f32
    # w2_ref: (H, H)    bf16   full weight 2, [in, out] layout, resident
    # b2_ref: (1, H)    f32
    # o_ref : (TB, H)
    x = x_ref[...].astype(jnp.bfloat16)           # in-kernel cast (VPU slack)
    z1 = jnp.dot(x, w1_ref[...], preferred_element_type=jnp.float32)
    z1 = jnp.maximum(z1 + b1_ref[...], 0.0)       # f32 bias + ReLU epilogue
    z2 = jnp.dot(z1.astype(jnp.bfloat16), w2_ref[...],
                 preferred_element_type=jnp.float32)
    z2 = jnp.maximum(z2 + b2_ref[...], 0.0)
    o_ref[...] = z2.astype(o_ref.dtype)


def _choose_tb(batch):
    # Fewest tiles needed: one tile whenever B fits (grid is a sequential loop
    # on single-TC v5e/v6e, so splitting small batches only adds ~0.35 us/step
    # overhead and halves MXU M-occupancy).  For large B use 512-row tiles
    # (multiple of 256 -> full MXU M pass, amortizes per-step overhead, total
    # double-buffered VMEM stays < ~8 MiB).
    if batch <= 1024:
        return max(8, _round_up(batch, 8))
    return 512


def prepare_torso_params(w1_t, b1, w2_t, b2):
    """One-time weight prep: bf16 matmul operands, f32 (1, H) biases.

    Do this once and keep the results as the model parameters so the casts are
    not re-streamed through HBM on every forward call.
    """
    w1_bf = jnp.asarray(w1_t, jnp.bfloat16)
    w2_bf = jnp.asarray(w2_t, jnp.bfloat16)
    b1f = jnp.asarray(b1, jnp.float32).reshape(1, -1)
    b2f = jnp.asarray(b2, jnp.float32).reshape(1, -1)
    return w1_bf, b1f, w2_bf, b2f


@functools.partial(jax.jit, static_argnames=("tb", "out_dtype"))
def torso_forward(x, w1_bf, b1, w2_bf, b2, *, tb=None, out_dtype=jnp.float32):
    """x: (B, D) f32; w1_bf: (D, H) bf16; b1: (1, H) f32; w2_bf: (H, H) bf16; b2: (1, H) f32."""
    B, D = x.shape
    H = w1_bf.shape[1]
    if tb is None:
        tb = _choose_tb(B)
    tb = int(tb)

    # Pad the batch up to a multiple of the tile only if needed; padded rows
    # are independent of real rows and are sliced off at the end.
    Bp = _round_up(B, tb)
    if Bp != B:
        x = jnp.pad(x, ((0, Bp - B), (0, 0)))

    grid = (Bp // tb,)
    out = pl.pallas_call(
        torso_kernel,
        out_shape=jax.ShapeDtypeStruct((Bp, H), out_dtype),
        grid_spec=pltpu.PrefetchScalarGridSpec(
            num_scalar_prefetch=0,
            grid=grid,
            in_specs=[
                # x tile streams; last dim D equals the full array dim so the
                # (8,128) constraint does not apply (D = 65 is fine).
                pl.BlockSpec((tb, D), lambda i: (i, 0)),
                pl.BlockSpec((D, H), lambda i: (0, 0)),   # full W1, resident
                pl.BlockSpec((1, H), lambda i: (0, 0)),   # b1, resident
                pl.BlockSpec((H, H), lambda i: (0, 0)),   # full W2, resident
                pl.BlockSpec((1, H), lambda i: (0, 0)),   # b2, resident
            ],
            out_specs=pl.BlockSpec((tb, H), lambda i: (i, 0)),
        ),
        compiler_params=pltpu.CompilerParams(
            # Batch axis is embarrassingly parallel.
            dimension_semantics=("parallel",),
        ),
    )(x, w1_bf, b1, w2_bf, b2)
    return out[:B]


def init_linear_params(key, in_dim, out_dim):
    """Deterministic init mimicking torch.nn.Linear default (U(+/- 1/sqrt(fan_in)))."""
    kw, kb = jax.random.split(key)
    bound = 1.0 / jnp.sqrt(jnp.float32(in_dim))
    # torch stores weight as (out, in); we keep the transposed (in, out) layout.
    w_t = jax.random.uniform(kw, (in_dim, out_dim), jnp.float32, -bound, bound)
    b = jax.random.uniform(kb, (1, out_dim), jnp.float32, -bound, bound)
    return w_t, b


if __name__ == "__main__":
    # Module defaults: S=4, scalar_size=1 -> input_dim = 65; hidden_dim = 512.
    S = 4
    scalar_size = 1
    input_dim = S * S * S + scalar_size      # 65
    hidden_dim = 512
    batch = 16                               # small demo batch -> single tile

    root = jax.random.PRNGKey(0)
    kx, k1, k2 = jax.random.split(root, 3)

    # x represents the flattened [S,S,S] tensor_input concatenated with the scalar step.
    x = jax.random.normal(kx, (batch, input_dim), jnp.float32)

    w1_t, b1 = init_linear_params(k1, input_dim, hidden_dim)
    w2_t, b2 = init_linear_params(k2, hidden_dim, hidden_dim)

    # One-time parameter prep (bf16 weights, f32 biases) hoisted out of the call path.
    w1_bf, b1f, w2_bf, b2f = prepare_torso_params(w1_t, b1, w2_t, b2)

    out = torso_forward(x, w1_bf, b1f, w2_bf, b2f)
    out = jax.block_until_ready(out)
    assert out.shape == (batch, hidden_dim)
    assert out.dtype == jnp.float32

    # Reference A: same arithmetic as the kernel (bf16 matmul inputs, f32 accumulate).
    xb = x.astype(jnp.bfloat16).astype(jnp.float32)
    w1b = w1_bf.astype(jnp.float32)
    w2b = w2_bf.astype(jnp.float32)
    z1b = jnp.maximum(xb @ w1b + b1f, 0.0)
    ref_bf = jnp.maximum(z1b.astype(jnp.bfloat16).astype(jnp.float32) @ w2b + b2f, 0.0)

    # Reference B: the pure-f32 PyTorch forward (loose tolerance; MXU inputs are bf16).
    z1f = jnp.maximum(x @ w1_t + b1, 0.0)
    ref_f32 = jnp.maximum(z1f @ w2_t + b2, 0.0)

    assert jnp.allclose(out, ref_bf, atol=1e-3, rtol=1e-3), "mismatch vs bf16-matched reference"
    assert jnp.allclose(out, ref_f32, atol=5e-2, rtol=5e-2), "mismatch vs f32 reference"

    print("KERNEL_OK")
</pallas_src>

<mosaic_0001>
module attributes {stable_mosaic.version = 11 : i64} {
  func.func @torso_kernel(%arg0: i32, %arg1: memref<16x65xf32, #tpu.memory_space<vmem>>, %arg2: memref<65x512xbf16, #tpu.memory_space<vmem>>, %arg3: memref<1x512xf32, #tpu.memory_space<vmem>>, %arg4: memref<512x512xbf16, #tpu.memory_space<vmem>>, %arg5: memref<1x512xf32, #tpu.memory_space<vmem>>, %arg6: memref<16x512xf32, #tpu.memory_space<vmem>>) attributes {dimension_semantics = [#tpu.dimension_semantics<parallel>], iteration_bounds = array<i64: 1>, scalar_prefetch = 0 : i64, scratch_operands = 0 : i64, tpu.core_type = #tpu.core_type<tc>, window_params = [{transform_indices = @transform_0, window_bounds = array<i64: 16, 65>}, {pipeline_mode = #tpu.pipeline_mode<synchronous>, transform_indices = @transform_1, window_bounds = array<i64: 65, 512>}, {pipeline_mode = #tpu.pipeline_mode<synchronous>, transform_indices = @transform_2, window_bounds = array<i64: 1, 512>}, {pipeline_mode = #tpu.pipeline_mode<synchronous>, transform_indices = @transform_3, window_bounds = array<i64: 512, 512>}, {pipeline_mode = #tpu.pipeline_mode<synchronous>, transform_indices = @transform_4, window_bounds = array<i64: 1, 512>}, {transform_indices = @transform_5, window_bounds = array<i64: 16, 512>}]} {
    %c0 = arith.constant 0 : index
    %c0_0 = arith.constant 0 : index
    %0 = vector.load %arg1[%c0, %c0_0] : memref<16x65xf32, #tpu.memory_space<vmem>>, vector<16x65xf32>
    %1 = arith.truncf %0 : vector<16x65xf32> to vector<16x65xbf16>
    %c0_1 = arith.constant 0 : index
    %c0_2 = arith.constant 0 : index
    %2 = vector.load %arg2[%c0_1, %c0_2] : memref<65x512xbf16, #tpu.memory_space<vmem>>, vector<65x512xbf16>
    %cst = arith.constant dense<0.000000e+00> : vector<16x512xf32>
    %3 = tpu.matmul %1, %2, %cst {dimension_numbers = #tpu.dot_dimension_numbers<[1], [0], [0], [1], [0, 0, 1, 1], [], []>} : vector<16x65xbf16>, vector<65x512xbf16>, vector<16x512xf32> -> vector<16x512xf32>
    %c0_3 = arith.constant 0 : index
    %c0_4 = arith.constant 0 : index
    %4 = vector.load %arg3[%c0_3, %c0_4] : memref<1x512xf32, #tpu.memory_space<vmem>>, vector<1x512xf32>
    %5 = vector.broadcast %4 : vector<1x512xf32> to vector<16x512xf32>
    %6 = arith.addf %3, %5 : vector<16x512xf32>
    %cst_5 = arith.constant 0.000000e+00 : f32
    %7 = vector.broadcast %cst_5 : f32 to vector<16x512xf32>
    %8 = arith.maximumf %6, %7 : vector<16x512xf32>
    %9 = arith.truncf %8 : vector<16x512xf32> to vector<16x512xbf16>
    %c0_6 = arith.constant 0 : index
    %c0_7 = arith.constant 0 : index
    %10 = vector.load %arg4[%c0_6, %c0_7] : memref<512x512xbf16, #tpu.memory_space<vmem>>, vector<512x512xbf16>
    %cst_8 = arith.constant dense<0.000000e+00> : vector<16x512xf32>
    %11 = tpu.matmul %9, %10, %cst_8 {dimension_numbers = #tpu.dot_dimension_numbers<[1], [0], [0], [1], [0, 0, 1, 1], [], []>} : vector<16x512xbf16>, vector<512x512xbf16>, vector<16x512xf32> -> vector<16x512xf32>
    %c0_9 = arith.constant 0 : index
    %c0_10 = arith.constant 0 : index
    %12 = vector.load %arg5[%c0_9, %c0_10] : memref<1x512xf32, #tpu.memory_space<vmem>>, vector<1x512xf32>
    %13 = vector.broadcast %12 : vector<1x512xf32> to vector<16x512xf32>
    %14 = arith.addf %11, %13 : vector<16x512xf32>
    %cst_11 = arith.constant 0.000000e+00 : f32
    %15 = vector.broadcast %cst_11 : f32 to vector<16x512xf32>
    %16 = arith.maximumf %14, %15 : vector<16x512xf32>
    %c0_12 = arith.constant 0 : index
    %c0_13 = arith.constant 0 : index
    %17 = vector.load %arg6[%c0_12, %c0_13] : memref<16x512xf32, #tpu.memory_space<vmem>>, vector<16x512xf32>
    tpu.vector_store %arg6[%c0_12, %c0_13], %16 {strides = array<i32>} : memref<16x512xf32, #tpu.memory_space<vmem>>, vector<16x512xf32>,
    return
  }
  func.func @transform_0(%arg0: i32) -> (i32, i32) {
    %c0_i32 = arith.constant 0 : i32
    %c0_i32_0 = arith.constant 0 : i32
    return %arg0, %c0_i32 : i32, i32
  }
  func.func @transform_1(%arg0: i32) -> (i32, i32) {
    %c0_i32 = arith.constant 0 : i32
    %c0_i32_0 = arith.constant 0 : i32
    %c0_i32_1 = arith.constant 0 : i32
    return %c0_i32, %c0_i32_0 : i32, i32
  }
  func.func @transform_2(%arg0: i32) -> (i32, i32) {
    %c0_i32 = arith.constant 0 : i32
    %c0_i32_0 = arith.constant 0 : i32
    %c0_i32_1 = arith.constant 0 : i32
    return %c0_i32, %c0_i32_0 : i32, i32
  }
  func.func @transform_3(%arg0: i32) -> (i32, i32) {
    %c0_i32 = arith.constant 0 : i32
    %c0_i32_0 = arith.constant 0 : i32
    %c0_i32_1 = arith.constant 0 : i32
    return %c0_i32, %c0_i32_0 : i32, i32
  }
  func.func @transform_4(%arg0: i32) -> (i32, i32) {
    %c0_i32 = arith.constant 0 : i32
    %c0_i32_0 = arith.constant 0 : i32
    %c0_i32_1 = arith.constant 0 : i32
    return %c0_i32, %c0_i32_0 : i32, i32
  }
  func.func @transform_5(%arg0: i32) -> (i32, i32) {
    %c0_i32 = arith.constant 0 : i32
    %c0_i32_0 = arith.constant 0 : i32
    return %arg0, %c0_i32 : i32, i32
  }
}

</mosaic_0001>

<llo_original>
// kernel: torso_forward.1
$region0: #{torso_forward.1}
  #allocation0 [shape = 'u32[]', space=smem, size = 0x4, offset = 0x4, fixed_abs, tag = 'smem constant byte address 0x4 - core index']
  #allocation1 [shape = 'u32[144,128]{1,0:T(1,128)}', space=vmem, size = 0x12000, scoped, tag = 'internal scratch']
  %s0 = inlined_call_operand.hbm [shape: f32[16,65], index: 0, kind: input, shape index: {}]
  %s1 = inlined_call_operand.hbm [shape: bf16[65,512], index: 1, kind: input, shape index: {}]
  %s2 = inlined_call_operand.hbm [shape: f32[1,512], index: 2, kind: input, shape index: {}]
  %s3 = inlined_call_operand.hbm [shape: bf16[512,512], index: 3, kind: input, shape index: {}]
  %s4 = inlined_call_operand.vmem [shape: f32[1,512], index: 4, kind: input, shape index: {}]
  %s5 = inlined_call_operand.hbm [shape: f32[16,512], index: 5, kind: output, shape index: {}]
  %s6 = sld [smem:[#allocation0]]
  $region46: #{torso_forward.1} parent=0
    _
  %s8 = ssub.s32 1, %s6
  %s9 = scalar_select 0, %s8, %s6
  $region1: #{torso_forward.1} parent=0
    #allocation2 [shape = 'u8[8192]{0}', space=vmem, size = 0x2000, scoped, tag = 'input window, operand 0, single buffered']
    #allocation3 [shape = 's32[1]{0}', space=sflag, size = 0x4, scoped, tag = 'scoped memory for torso_forward.1']
    #allocation4 [shape = 's32[1]{0}', space=sflag, size = 0x4, scoped, tag = 'scoped memory for torso_forward.1']
    #allocation5 [shape = 'u8[73728]{0}', space=vmem, size = 0x12000, scoped, tag = 'input window, operand 1, single buffered']
    #allocation6 [shape = 's32[1]{0}', space=sflag, size = 0x4, scoped, tag = 'scoped memory for torso_forward.1']
    #allocation7 [shape = 'u8[2048]{0}', space=vmem, size = 0x800, scoped, tag = 'input window, operand 2, single buffered']
    #allocation8 [shape = 'u8[524288]{0}', space=vmem, size = 0x80000, scoped, tag = 'input window, operand 3, single buffered']
    #allocation9 [shape = 's32[1]{0}', space=sflag, size = 0x4, scoped, tag = 'scoped memory for torso_forward.1']
    #allocation10 [shape = 'u8[32768]{0}', space=vmem, size = 0x8000, scoped, tag = 'output window, operand 0, single buffered']
    %10 = vsyncpa [#allocation3], 0
    %11 = vsyncpa [#allocation6], 0
    %12 = vsyncpa [#allocation9], 0
    %13 = vsyncpa [#allocation4], 0
    // Predicated region
    $region2: #{torso_forward.1} parent=1 // pred_check
      _
    $region3: #{torso_forward.1} parent=1 // pred_check_branch
      %15 = sbr.rel (0) target = $region5
    $region4: #{torso_forward.1} parent=1 // pred_region
      %s17 = ssub.s32 256, 256
      %18 = vsyncadd [#allocation3], %s17
      %s19 = sshll.u32 [#allocation2], 4
      %s20 = int_to_ptr.vmem [resolvable:$true] %s19
      %25 = dma.hbm_to_vmem [thread:$0]  %s0, 256, %s20, [#allocation3], 128, 128, 8
    $region5: #{torso_forward.1} parent=1 // pred_fallthru
      _
    // Predicated region
    $region6: #{torso_forward.1} parent=1 // pred_check
      _
    $region7: #{torso_forward.1} parent=1 // pred_check_branch
      %27 = sbr.rel (0) target = $region9
    $region8: #{torso_forward.1} parent=1 // pred_region
      %s29 = ssub.s32 2304, 2304
      %30 = vsyncadd [#allocation6], %s29
      %s31 = sshll.u32 [#allocation5], 4
      %s32 = int_to_ptr.vmem [resolvable:$true] %s31
      %37 = dma.hbm_to_vmem [thread:$0]  %s1, 2304, %s32, [#allocation6], 256, 256, 16
    $region9: #{torso_forward.1} parent=1 // pred_fallthru
      _
    // Predicated region
    $region10: #{torso_forward.1} parent=1 // pred_check
      _
    $region11: #{torso_forward.1} parent=1 // pred_check_branch
      %39 = sbr.rel (0) target = $region13
    $region12: #{torso_forward.1} parent=1 // pred_region
      %s41 = ssub.s32 64, 64
      %42 = vsyncadd [#allocation6], %s41
      %s44 = sshll.u32 [#allocation7], 4
      %s45 = int_to_ptr.vmem [resolvable:$true] %s44
      %47 = dma.hbm_to_vmem [thread:$0]  %s2, 64, %s45, [#allocation6]
    $region13: #{torso_forward.1} parent=1 // pred_fallthru
      _
    // Predicated region
    $region14: #{torso_forward.1} parent=1 // pred_check
      _
    $region15: #{torso_forward.1} parent=1 // pred_check_branch
      %49 = sbr.rel (0) target = $region17
    $region16: #{torso_forward.1} parent=1 // pred_region
      %s51 = ssub.s32 16384, 16384
      %52 = vsyncadd [#allocation9], %s51
      %s53 = sshll.u32 [#allocation8], 4
      %s54 = int_to_ptr.vmem [resolvable:$true] %s53
      %59 = dma.hbm_to_vmem [thread:$0]  %s3, 16384, %s54, [#allocation9], 256, 256, 16
    $region17: #{torso_forward.1} parent=1 // pred_fallthru
      _
    // Predicated region
    $region18: #{torso_forward.1} parent=1 // pred_check
      _
    $region19: #{torso_forward.1} parent=1 // pred_check_branch
      %61 = sbr.rel (0) target = $region21
    $region20: #{torso_forward.1} parent=1 // pred_region
      _
    $region21: #{torso_forward.1} parent=1 // pred_fallthru
      _
    // Predicated region
    $region22: #{torso_forward.1} parent=1 // pred_check
      _
    $region23: #{torso_forward.1} parent=1 // pred_check_branch
      %63 = sbr.rel (0) target = $region25
    $region24: #{torso_forward.1} parent=1 // pred_region
      %64 = dma.done [#allocation3], 256
    $region25: #{torso_forward.1} parent=1 // pred_fallthru
      _
    // Predicated region
    $region26: #{torso_forward.1} parent=1 // pred_check
      _
    $region27: #{torso_forward.1} parent=1 // pred_check_branch
      %66 = sbr.rel (0) target = $region29
    $region28: #{torso_forward.1} parent=1 // pred_region
      %67 = dma.done [#allocation6], 2304
    $region29: #{torso_forward.1} parent=1 // pred_fallthru
      _
    // Predicated region
    $region30: #{torso_forward.1} parent=1 // pred_check
      _
    $region31: #{torso_forward.1} parent=1 // pred_check_branch
      %69 = sbr.rel (0) target = $region33
    $region32: #{torso_forward.1} parent=1 // pred_region
      %70 = dma.done [#allocation6], 64
    $region33: #{torso_forward.1} parent=1 // pred_fallthru
      _
    // Predicated region
    $region34: #{torso_forward.1} parent=1 // pred_check
      _
    $region35: #{torso_forward.1} parent=1 // pred_check_branch
      %72 = sbr.rel (0) target = $region37
    $region36: #{torso_forward.1} parent=1 // pred_region
      %73 = dma.done [#allocation9], 16384
    $region37: #{torso_forward.1} parent=1 // pred_fallthru
      _
    %v75 = vld [vmem:[#allocation2] sm:$0xff]
    %v76 = vld [vmem:[#allocation2 + $0x8] sm:$0xff]
    %v77 = vpack.c.bf16 %v76, %v75
    %v78 = vld [vmem:[#allocation5] sm:$0xff]
    %v79 = vld [vmem:[#allocation5 + $0x8] sm:$0xff]
    %v80 = vld [vmem:[#allocation5 + $0x10] sm:$0xff]
    %v81 = vld [vmem:[#allocation5 + $0x18] sm:$0xff]
    %v82 = vld [vmem:[#allocation5 + $0x20] sm:$0xff]
    %v83 = vld [vmem:[#allocation5 + $0x28] sm:$0xff]
    %v84 = vld [vmem:[#allocation5 + $0x30] sm:$0xff]
    %v85 = vld [vmem:[#allocation5 + $0x38] sm:$0xff]
    %v86 = vld [vmem:[#allocation5 + $0x40] sm:$0xff]
    %v87 = vld [vmem:[#allocation5 + $0x48] sm:$0xff]
    %v88 = vld [vmem:[#allocation5 + $0x50] sm:$0xff]
    %v89 = vld [vmem:[#allocation5 + $0x58] sm:$0xff]
    %v90 = vld [vmem:[#allocation5 + $0x60] sm:$0xff]
    %v91 = vld [vmem:[#allocation5 + $0x68] sm:$0xff]
    %v92 = vld [vmem:[#allocation5 + $0x70] sm:$0xff]
    %v93 = vld [vmem:[#allocation5 + $0x78] sm:$0xff]
    %v94 = vld [vmem:[#allocation5 + $0x80] sm:$0x11]
    %v95 = vld [vmem:[#allocation5 + $0x88] sm:$0x11]
    %v96 = vld [vmem:[#allocation7] sm:$0xf]
    %v98 = vlaneseq
    %v99 = vshrl.u32 %v98, 7
    %v100 = vsub.s32 0, %v99
    %v101 = vrot.slane %v96, %v100
    %v102 = vlaneseq
    %v103 = vshrl.u32 %v102, 7
    %v104 = vsub.s32 1, %v103
    %v105 = vrot.slane %v96, %v104
    %v106 = vlaneseq
    %v107 = vshrl.u32 %v106, 7
    %v108 = vsub.s32 2, %v107
    %v109 = vrot.slane %v96, %v108
    %v110 = vlaneseq
    %v111 = vshrl.u32 %v110, 7
    %v112 = vsub.s32 3, %v111
    %v113 = vrot.slane %v96, %v112
    %v136 = vunpack.c.l.b16 %v78
    %v137 = vunpack.c.h.b16 %v78
    %v138 = vunpack.c.l.b16 %v79
    %v139 = vunpack.c.h.b16 %v79
    %v140 = vunpack.c.l.b16 %v80
    %v141 = vunpack.c.h.b16 %v80
    %v142 = vunpack.c.l.b16 %v81
    %v143 = vunpack.c.h.b16 %v81
    %v144 = vunpack.c.l.b16 %v82
    %v145 = vunpack.c.h.b16 %v82
    %v146 = vunpack.c.l.b16 %v83
    %v147 = vunpack.c.h.b16 %v83
    %v148 = vunpack.c.l.b16 %v84
    %v149 = vunpack.c.h.b16 %v84
    %v150 = vunpack.c.l.b16 %v85
    %v151 = vunpack.c.h.b16 %v85
    %v152 = vunpack.c.l.b16 %v86
    %v153 = vunpack.c.h.b16 %v86
    %v154 = vunpack.c.l.b16 %v87
    %v155 = vunpack.c.h.b16 %v87
    %v156 = vunpack.c.l.b16 %v88
    %v157 = vunpack.c.h.b16 %v88
    %v158 = vunpack.c.l.b16 %v89
    %v159 = vunpack.c.h.b16 %v89
    %v160 = vunpack.c.l.b16 %v90
    %v161 = vunpack.c.h.b16 %v90
    %v162 = vunpack.c.l.b16 %v91
    %v163 = vunpack.c.h.b16 %v91
    %v164 = vunpack.c.l.b16 %v92
    %v165 = vunpack.c.h.b16 %v92
    %v166 = vunpack.c.l.b16 %v93
    %v167 = vunpack.c.h.b16 %v93
    %v168 = vunpack.c.l.b16 %v94
    %v169 = vunpack.c.h.b16 %v94
    %v170 = vunpack.c.l.b16 %v95
    %v171 = vunpack.c.h.b16 %v95
    %v172 = vpack.c.b16 %v140, %v136
    %v173 = vpack.c.b16 %v141, %v137
    %v174 = vpack.c.b16 %v142, %v138
    %v175 = vpack.c.b16 %v143, %v139
    %v176 = vpack.c.b16 %v148, %v144
    %v177 = vpack.c.b16 %v149, %v145
    %v178 = vpack.c.b16 %v150, %v146
    %v179 = vpack.c.b16 %v151, %v147
    %v180 = vpack.c.b16 %v156, %v152
    %v181 = vpack.c.b16 %v157, %v153
    %v182 = vpack.c.b16 %v158, %v154
    %v183 = vpack.c.b16 %v159, %v155
    %v184 = vpack.c.b16 %v164, %v160
    %v185 = vpack.c.b16 %v165, %v161
    %v186 = vpack.c.b16 %v166, %v162
    %v187 = vpack.c.b16 %v167, %v163
    %v188 = vpack.c.b16 %v168, %v168
    %v189 = vpack.c.b16 %v169, %v169
    %v190 = vpack.c.b16 %v170, %v170
    %v191 = vpack.c.b16 %v171, %v171
    %vm208 = vcmask 531456
    %v210 = vsel %vm208, %v77, 0
    %vm212 = vcmask 1040384
    %v213 = vsel 0, 4294967295, 65535
    %v214 = vsel %vm212, %v213, 0
    %v216 = vand.u32 %v188, %v214
    %v219 = vand.u32 %v189, %v214
    %v222 = vand.u32 %v190, %v214
    %v225 = vand.u32 %v191, %v214
    %227 = vmatprep.subr.bf16.mxu0 0
    %228 = vmatpush1.bf16.msra.mxu0 0
    %229 = vmatprep.subr.bf16.mxu0 0
    %230 = vmatpush1.bf16.msra.mxu0 0
    %231 = vmatprep.subr.bf16.mxu0 0
    %232 = vmatpush1.bf16.msra.mxu0 0
    %233 = vmatprep.subr.bf16.mxu0 %v219
    %234 = vmatpush1.bf16.msra.mxu0 %v216
    %235 = vmatprep.subr.bf16.mxu0 %v185
    %236 = vmatpush1.bf16.msra.mxu0 %v184
    %237 = vmatprep.subr.bf16.mxu0 %v181
    %238 = vmatpush1.bf16.msra.mxu0 %v180
    %239 = vmatprep.subr.bf16.mxu0 %v177
    %240 = vmatpush1.bf16.msra.mxu0 %v176
    %241 = vmatprep.subr.bf16.mxu0 %v173
    %242 = vmatpush1.bf16.msra.mxu0 %v172
    %243 = vmatprep.subr.bf16.mxu0 0
    %244 = vmatpush2.bf16.msra.mxu0 0
    %245 = vmatprep.subr.bf16.mxu0 0
    %246 = vmatpush2.bf16.msra.mxu0 0
    %247 = vmatprep.subr.bf16.mxu0 0
    %248 = vmatpush2.bf16.msra.mxu0 0
    %249 = vmatprep.subr.bf16.mxu0 0
    %250 = vmatpush2.bf16.msra.mxu0 0
    %251 = vmatprep.subr.bf16.mxu0 0
    %252 = vmatpush2.bf16.msra.mxu0 0
    %253 = vmatprep.subr.bf16.mxu0 0
    %254 = vmatpush2.bf16.msra.mxu0 0
    %255 = vmatprep.subr.bf16.mxu0 0
    %256 = vmatpush2.bf16.msra.mxu0 0
    %257 = vmatprep.subr.bf16.mxu0 0
    %258 = vmatpush2.bf16.msra.mxu0 0
    %259 = vmatprep.mubr.bf16.mxu0 0
    %260 = vmatmul.mubr.bf16.gmra.mxu0 %v210
    %v261 = vpop.f32.mrf.mxu0
    %v262 = vadd.f32 %v101, %v261
    %v263 = vpop.f32.mrf.mxu0
    %v264 = vadd.f32 %v105, %v263
    %v265 = vpop.f32.mrf.mxu0
    %v266 = vadd.f32 %v101, %v265
    %v267 = vpop.f32.mrf.mxu0
    %v268 = vadd.f32 %v105, %v267
    %269 = vdwg.mxu0
    %270 = vmatprep.subr.bf16.mxu0 0
    %271 = vmatpush1.bf16.msra.mxu0 0
    %272 = vmatprep.subr.bf16.mxu0 0
    %273 = vmatpush1.bf16.msra.mxu0 0
    %274 = vmatprep.subr.bf16.mxu0 0
    %275 = vmatpush1.bf16.msra.mxu0 0
    %276 = vmatprep.subr.bf16.mxu0 %v225
    %277 = vmatpush1.bf16.msra.mxu0 %v222
    %278 = vmatprep.subr.bf16.mxu0 %v187
    %279 = vmatpush1.bf16.msra.mxu0 %v186
    %280 = vmatprep.subr.bf16.mxu0 %v183
    %281 = vmatpush1.bf16.msra.mxu0 %v182
    %282 = vmatprep.subr.bf16.mxu0 %v179
    %283 = vmatpush1.bf16.msra.mxu0 %v178
    %284 = vmatprep.subr.bf16.mxu0 %v175
    %285 = vmatpush1.bf16.msra.mxu0 %v174
    %286 = vmatprep.subr.bf16.mxu0 0
    %287 = vmatpush2.bf16.msra.mxu0 0
    %288 = vmatprep.subr.bf16.mxu0 0
    %289 = vmatpush2.bf16.msra.mxu0 0
    %290 = vmatprep.subr.bf16.mxu0 0
    %291 = vmatpush2.bf16.msra.mxu0 0
    %292 = vmatprep.subr.bf16.mxu0 0
    %293 = vmatpush2.bf16.msra.mxu0 0
    %294 = vmatprep.subr.bf16.mxu0 0
    %295 = vmatpush2.bf16.msra.mxu0 0
    %296 = vmatprep.subr.bf16.mxu0 0
    %297 = vmatpush2.bf16.msra.mxu0 0
    %298 = vmatprep.subr.bf16.mxu0 0
    %299 = vmatpush2.bf16.msra.mxu0 0
    %300 = vmatprep.subr.bf16.mxu0 0
    %301 = vmatpush2.bf16.msra.mxu0 0
    %302 = vmatprep.mubr.bf16.mxu0 0
    %303 = vmatmul.mubr.bf16.gmra.mxu0 %v210
    %v304 = vpop.f32.mrf.mxu0
    %v305 = vadd.f32 %v109, %v304
    %v306 = vpop.f32.mrf.mxu0
    %v307 = vadd.f32 %v113, %v306
    %v308 = vpop.f32.mrf.mxu0
    %v309 = vadd.f32 %v109, %v308
    %v310 = vpop.f32.mrf.mxu0
    %v311 = vadd.f32 %v113, %v310
    %312 = vdwg.mxu0
    %v313 = vmax.f32 %v262, 0.0
    %v314 = vmax.f32 %v264, 0.0
    %v315 = vmax.f32 %v305, 0.0
    %v316 = vmax.f32 %v307, 0.0
    %v317 = vmax.f32 %v266, 0.0
    %v318 = vmax.f32 %v268, 0.0
    %v319 = vmax.f32 %v309, 0.0
    %v320 = vmax.f32 %v311, 0.0
    %v321 = vpack.c.bf16 %v317, %v313
    %v322 = vpack.c.bf16 %v318, %v314
    %v323 = vpack.c.bf16 %v319, %v315
    %v324 = vpack.c.bf16 %v320, %v316
    %v325 = vld [vmem:[#allocation8] sm:$0xff]
    %v326 = vld [vmem:[#allocation8 + $0x8] sm:$0xff]
    %v327 = vld [vmem:[#allocation8 + $0x10] sm:$0xff]
    %v328 = vld [vmem:[#allocation8 + $0x18] sm:$0xff]
    %v329 = vld [vmem:[#allocation8 + $0x20] sm:$0xff]
    %v330 = vld [vmem:[#allocation8 + $0x28] sm:$0xff]
    %v331 = vld [vmem:[#allocation8 + $0x30] sm:$0xff]
    %v332 = vld [vmem:[#allocation8 + $0x38] sm:$0xff]
    %v333 = vld [vmem:[#allocation8 + $0x40] sm:$0xff]
    %v334 = vld [vmem:[#allocation8 + $0x48] sm:$0xff]
    %v335 = vld [vmem:[#allocation8 + $0x50] sm:$0xff]
    %v336 = vld [vmem:[#allocation8 + $0x58] sm:$0xff]
    %v337 = vld [vmem:[#allocation8 + $0x60] sm:$0xff]
    %v338 = vld [vmem:[#allocation8 + $0x68] sm:$0xff]
    %v339 = vld [vmem:[#allocation8 + $0x70] sm:$0xff]
    %v340 = vld [vmem:[#allocation8 + $0x78] sm:$0xff]
    %v341 = vld [vmem:[#allocation8 + $0x80] sm:$0xff]
    %v342 = vld [vmem:[#allocation8 + $0x88] sm:$0xff]
    %v343 = vld [vmem:[#allocation8 + $0x90] sm:$0xff]
    %v344 = vld [vmem:[#allocation8 + $0x98] sm:$0xff]
    %v345 = vld [vmem:[#allocation8 + $0xa0] sm:$0xff]
    %v346 = vld [vmem:[#allocation8 + $0xa8] sm:$0xff]
    %v347 = vld [vmem:[#allocation8 + $0xb0] sm:$0xff]
    %v348 = vld [vmem:[#allocation8 + $0xb8] sm:$0xff]
    %v349 = vld [vmem:[#allocation8 + $0xc0] sm:$0xff]
    %v350 = vld [vmem:[#allocation8 + $0xc8] sm:$0xff]
    %v351 = vld [vmem:[#allocation8 + $0xd0] sm:$0xff]
    %v352 = vld [vmem:[#allocation8 + $0xd8] sm:$0xff]
    %v353 = vld [vmem:[#allocation8 + $0xe0] sm:$0xff]
    %v354 = vld [vmem:[#allocation8 + $0xe8] sm:$0xff]
    %v355 = vld [vmem:[#allocation8 + $0xf0] sm:$0xff]
    %v356 = vld [vmem:[#allocation8 + $0xf8] sm:$0xff]
    %v357 = vld [vmem:[#allocation8 + $0x100] sm:$0xff]
    %v358 = vld [vmem:[#allocation8 + $0x108] sm:$0xff]
    %v359 = vld [vmem:[#allocation8 + $0x110] sm:$0xff]
    %v360 = vld [vmem:[#allocation8 + $0x118] sm:$0xff]
    %v361 = vld [vmem:[#allocation8 + $0x120] sm:$0xff]
    %v362 = vld [vmem:[#allocation8 + $0x128] sm:$0xff]
    %v363 = vld [vmem:[#allocation8 + $0x130] sm:$0xff]
    %v364 = vld [vmem:[#allocation8 + $0x138] sm:$0xff]
    %v365 = vld [vmem:[#allocation8 + $0x140] sm:$0xff]
    %v366 = vld [vmem:[#allocation8 + $0x148] sm:$0xff]
    %v367 = vld [vmem:[#allocation8 + $0x150] sm:$0xff]
    %v368 = vld [vmem:[#allocation8 + $0x158] sm:$0xff]
    %v369 = vld [vmem:[#allocation8 + $0x160] sm:$0xff]
    %v370 = vld [vmem:[#allocation8 + $0x168] sm:$0xff]
    %v371 = vld [vmem:[#allocation8 + $0x170] sm:$0xff]
    %v372 = vld [vmem:[#allocation8 + $0x178] sm:$0xff]
    %v373 = vld [vmem:[#allocation8 + $0x180] sm:$0xff]
    %v374 = vld [vmem:[#allocation8 + $0x188] sm:$0xff]
    %v375 = vld [vmem:[#allocation8 + $0x190] sm:$0xff]
    %v376 = vld [vmem:[#allocation8 + $0x198] sm:$0xff]
    %v377 = vld [vmem:[#allocation8 + $0x1a0] sm:$0xff]
    %v378 = vld [vmem:[#allocation8 + $0x1a8] sm:$0xff]
    %v379 = vld [vmem:[#allocation8 + $0x1b0] sm:$0xff]
    %v380 = vld [vmem:[#allocation8 + $0x1b8] sm:$0xff]
    %v381 = vld [vmem:[#allocation8 + $0x1c0] sm:$0xff]
    %v382 = vld [vmem:[#allocation8 + $0x1c8] sm:$0xff]
    %v383 = vld [vmem:[#allocation8 + $0x1d0] sm:$0xff]
    %v384 = vld [vmem:[#allocation8 + $0x1d8] sm:$0xff]
    %v385 = vld [vmem:[#allocation8 + $0x1e0] sm:$0xff]
    %v386 = vld [vmem:[#allocation8 + $0x1e8] sm:$0xff]
    %v387 = vld [vmem:[#allocation8 + $0x1f0] sm:$0xff]
    %v388 = vld [vmem:[#allocation8 + $0x1f8] sm:$0xff]
    %v389 = vld [vmem:[#allocation8 + $0x200] sm:$0xff]
    %v390 = vld [vmem:[#allocation8 + $0x208] sm:$0xff]
    %v391 = vld [vmem:[#allocation8 + $0x210] sm:$0xff]
    %v392 = vld [vmem:[#allocation8 + $0x218] sm:$0xff]
    %v393 = vld [vmem:[#allocation8 + $0x220] sm:$0xff]
    %v394 = vld [vmem:[#allocation8 + $0x228] sm:$0xff]
    %v395 = vld [vmem:[#allocation8 + $0x230] sm:$0xff]
    %v396 = vld [vmem:[#allocation8 + $0x238] sm:$0xff]
    %v397 = vld [vmem:[#allocation8 + $0x240] sm:$0xff]
    %v398 = vld [vmem:[#allocation8 + $0x248] sm:$0xff]
    %v399 = vld [vmem:[#allocation8 + $0x250] sm:$0xff]
    %v400 = vld [vmem:[#allocation8 + $0x258] sm:$0xff]
    %v401 = vld [vmem:[#allocation8 + $0x260] sm:$0xff]
    %v402 = vld [vmem:[#allocation8 + $0x268] sm:$0xff]
    %v403 = vld [vmem:[#allocation8 + $0x270] sm:$0xff]
    %v404 = vld [vmem:[#allocation8 + $0x278] sm:$0xff]
    %v405 = vld [vmem:[#allocation8 + $0x280] sm:$0xff]
    %v406 = vld [vmem:[#allocation8 + $0x288] sm:$0xff]
    %v407 = vld [vmem:[#allocation8 + $0x290] sm:$0xff]
    %v408 = vld [vmem:[#allocation8 + $0x298] sm:$0xff]
    %v409 = vld [vmem:[#allocation8 + $0x2a0] sm:$0xff]
    %v410 = vld [vmem:[#allocation8 + $0x2a8] sm:$0xff]
    %v411 = vld [vmem:[#allocation8 + $0x2b0] sm:$0xff]
    %v412 = vld [vmem:[#allocation8 + $0x2b8] sm:$0xff]
    %v413 = vld [vmem:[#allocation8 + $0x2c0] sm:$0xff]
    %v414 = vld [vmem:[#allocation8 + $0x2c8] sm:$0xff]
    %v415 = vld [vmem:[#allocation8 + $0x2d0] sm:$0xff]
    %v416 = vld [vmem:[#allocation8 + $0x2d8] sm:$0xff]
    %v417 = vld [vmem:[#allocation8 + $0x2e0] sm:$0xff]
    %v418 = vld [vmem:[#allocation8 + $0x2e8] sm:$0xff]
    %v419 = vld [vmem:[#allocation8 + $0x2f0] sm:$0xff]
    %v420 = vld [vmem:[#allocation8 + $0x2f8] sm:$0xff]
    %v421 = vld [vmem:[#allocation8 + $0x300] sm:$0xff]
    %v422 = vld [vmem:[#allocation8 + $0x308] sm:$0xff]
    %v423 = vld [vmem:[#allocation8 + $0x310] sm:$0xff]
    %v424 = vld [vmem:[#allocation8 + $0x318] sm:$0xff]
    %v425 = vld [vmem:[#allocation8 + $0x320] sm:$0xff]
    %v426 = vld [vmem:[#allocation8 + $0x328] sm:$0xff]
    %v427 = vld [vmem:[#allocation8 + $0x330] sm:$0xff]
    %v428 = vld [vmem:[#allocation8 + $0x338] sm:$0xff]
    %v429 = vld [vmem:[#allocation8 + $0x340] sm:$0xff]
    %v430 = vld [vmem:[#allocation8 + $0x348] sm:$0xff]
    %v431 = vld [vmem:[#allocation8 + $0x350] sm:$0xff]
    %v432 = vld [vmem:[#allocation8 + $0x358] sm:$0xff]
    %v433 = vld [vmem:[#allocation8 + $0x360] sm:$0xff]
    %v434 = vld [vmem:[#allocation8 + $0x368] sm:$0xff]
    %v435 = vld [vmem:[#allocation8 + $0x370] sm:$0xff]
    %v436 = vld [vmem:[#allocation8 + $0x378] sm:$0xff]
    %v437 = vld [vmem:[#allocation8 + $0x380] sm:$0xff]
    %v438 = vld [vmem:[#allocation8 + $0x388] sm:$0xff]
    %v439 = vld [vmem:[#allocation8 + $0x390] sm:$0xff]
    %v440 = vld [vmem:[#allocation8 + $0x398] sm:$0xff]
    %v441 = vld [vmem:[#allocation8 + $0x3a0] sm:$0xff]
    %v442 = vld [vmem:[#allocation8 + $0x3a8] sm:$0xff]
    %v443 = vld [vmem:[#allocation8 + $0x3b0] sm:$0xff]
    %v444 = vld [vmem:[#allocation8 + $0x3b8] sm:$0xff]
    %v445 = vld [vmem:[#allocation8 + $0x3c0] sm:$0xff]
    %v446 = vld [vmem:[#allocation8 + $0x3c8] sm:$0xff]
    %v447 = vld [vmem:[#allocation8 + $0x3d0] sm:$0xff]
    %v448 = vld [vmem:[#allocation8 + $0x3d8] sm:$0xff]
    %v449 = vld [vmem:[#allocation8 + $0x3e0] sm:$0xff]
    %v450 = vld [vmem:[#allocation8 + $0x3e8] sm:$0xff]
    %v451 = vld [vmem:[#allocation8 + $0x3f0] sm:$0xff]
    %v452 = vld [vmem:[#allocation8 + $0x3f8] sm:$0xff]
    %v453 = vld [vmem:[%s4] sm:$0xf]
    %v455 = vlaneseq
    %v456 = vshrl.u32 %v455, 7
    %v457 = vsub.s32 0, %v456
    %v458 = vrot.slane %v453, %v457
    %v459 = vlaneseq
    %v460 = vshrl.u32 %v459, 7
    %v461 = vsub.s32 1, %v460
    %v462 = vrot.slane %v453, %v461
    %v463 = vlaneseq
    %v464 = vshrl.u32 %v463, 7
    %v465 = vsub.s32 2, %v464
    %v466 = vrot.slane %v453, %v465
    %v467 = vlaneseq
    %v468 = vshrl.u32 %v467, 7
    %v469 = vsub.s32 3, %v468
    %v470 = vrot.slane %v453, %v469
    %v603 = vunpack.c.l.b16 %v325
    %v604 = vunpack.c.h.b16 %v325
    %v605 = vunpack.c.l.b16 %v326
    %v606 = vunpack.c.h.b16 %v326
    %v607 = vunpack.c.l.b16 %v327
    %v608 = vunpack.c.h.b16 %v327
    %v609 = vunpack.c.l.b16 %v328
    %v610 = vunpack.c.h.b16 %v328
    %v611 = vunpack.c.l.b16 %v329
    %v612 = vunpack.c.h.b16 %v329
    %v613 = vunpack.c.l.b16 %v330
    %v614 = vunpack.c.h.b16 %v330
    %v615 = vunpack.c.l.b16 %v331
    %v616 = vunpack.c.h.b16 %v331
    %v617 = vunpack.c.l.b16 %v332
    %v618 = vunpack.c.h.b16 %v332
    %v619 = vunpack.c.l.b16 %v333
    %v620 = vunpack.c.h.b16 %v333
    %v621 = vunpack.c.l.b16 %v334
    %v622 = vunpack.c.h.b16 %v334
    %v623 = vunpack.c.l.b16 %v335
    %v624 = vunpack.c.h.b16 %v335
    %v625 = vunpack.c.l.b16 %v336
    %v626 = vunpack.c.h.b16 %v336
    %v627 = vunpack.c.l.b16 %v337
    %v628 = vunpack.c.h.b16 %v337
    %v629 = vunpack.c.l.b16 %v338
    %v630 = vunpack.c.h.b16 %v338
    %v631 = vunpack.c.l.b16 %v339
    %v632 = vunpack.c.h.b16 %v339
    %v633 = vunpack.c.l.b16 %v340
    %v634 = vunpack.c.h.b16 %v340
    %v635 = vunpack.c.l.b16 %v341
    %v636 = vunpack.c.h.b16 %v341
    %v637 = vunpack.c.l.b16 %v342
    %v638 = vunpack.c.h.b16 %v342
    %v639 = vunpack.c.l.b16 %v343
    %v640 = vunpack.c.h.b16 %v343
    %v641 = vunpack.c.l.b16 %v344
    %v642 = vunpack.c.h.b16 %v344
    %v643 = vunpack.c.l.b16 %v345
    %v644 = vunpack.c.h.b16 %v345
    %v645 = vunpack.c.l.b16 %v346
    %v646 = vunpack.c.h.b16 %v346
    %v647 = vunpack.c.l.b16 %v347
    %v648 = vunpack.c.h.b16 %v347
    %v649 = vunpack.c.l.b16 %v348
    %v650 = vunpack.c.h.b16 %v348
    %v651 = vunpack.c.l.b16 %v349
    %v652 = vunpack.c.h.b16 %v349
    %v653 = vunpack.c.l.b16 %v350
    %v654 = vunpack.c.h.b16 %v350
    %v655 = vunpack.c.l.b16 %v351
    %v656 = vunpack.c.h.b16 %v351
    %v657 = vunpack.c.l.b16 %v352
    %v658 = vunpack.c.h.b16 %v352
    %v659 = vunpack.c.l.b16 %v353
    %v660 = vunpack.c.h.b16 %v353
    %v661 = vunpack.c.l.b16 %v354
    %v662 = vunpack.c.h.b16 %v354
    %v663 = vunpack.c.l.b16 %v355
    %v664 = vunpack.c.h.b16 %v355
    %v665 = vunpack.c.l.b16 %v356
    %v666 = vunpack.c.h.b16 %v356
    %v667 = vunpack.c.l.b16 %v357
    %v668 = vunpack.c.h.b16 %v357
    %v669 = vunpack.c.l.b16 %v358
    %v670 = vunpack.c.h.b16 %v358
    %v671 = vunpack.c.l.b16 %v359
    %v672 = vunpack.c.h.b16 %v359
    %v673 = vunpack.c.l.b16 %v360
    %v674 = vunpack.c.h.b16 %v360
    %v675 = vunpack.c.l.b16 %v361
    %v676 = vunpack.c.h.b16 %v361
    %v677 = vunpack.c.l.b16 %v362
    %v678 = vunpack.c.h.b16 %v362
    %v679 = vunpack.c.l.b16 %v363
    %v680 = vunpack.c.h.b16 %v363
    %v681 = vunpack.c.l.b16 %v364
    %v682 = vunpack.c.h.b16 %v364
    %v683 = vunpack.c.l.b16 %v365
    %v684 = vunpack.c.h.b16 %v365
    %v685 = vunpack.c.l.b16 %v366
    %v686 = vunpack.c.h.b16 %v366
    %v687 = vunpack.c.l.b16 %v367
    %v688 = vunpack.c.h.b16 %v367
    %v689 = vunpack.c.l.b16 %v368
    %v690 = vunpack.c.h.b16 %v368
    %v691 = vunpack.c.l.b16 %v369
    %v692 = vunpack.c.h.b16 %v369
    %v693 = vunpack.c.l.b16 %v370
    %v694 = vunpack.c.h.b16 %v370
    %v695 = vunpack.c.l.b16 %v371
    %v696 = vunpack.c.h.b16 %v371
    %v697 = vunpack.c.l.b16 %v372
    %v698 = vunpack.c.h.b16 %v372
    %v699 = vunpack.c.l.b16 %v373
    %v700 = vunpack.c.h.b16 %v373
    %v701 = vunpack.c.l.b16 %v374
    %v702 = vunpack.c.h.b16 %v374
    %v703 = vunpack.c.l.b16 %v375
    %v704 = vunpack.c.h.b16 %v375
    %v705 = vunpack.c.l.b16 %v376
    %v706 = vunpack.c.h.b16 %v376
    %v707 = vunpack.c.l.b16 %v377
    %v708 = vunpack.c.h.b16 %v377
    %v709 = vunpack.c.l.b16 %v378
    %v710 = vunpack.c.h.b16 %v378
    %v711 = vunpack.c.l.b16 %v379
    %v712 = vunpack.c.h.b16 %v379
    %v713 = vunpack.c.l.b16 %v380
    %v714 = vunpack.c.h.b16 %v380
    %v715 = vunpack.c.l.b16 %v381
    %v716 = vunpack.c.h.b16 %v381
    %v717 = vunpack.c.l.b16 %v382
    %v718 = vunpack.c.h.b16 %v382
    %v719 = vunpack.c.l.b16 %v383
    %v720 = vunpack.c.h.b16 %v383
    %v721 = vunpack.c.l.b16 %v384
    %v722 = vunpack.c.h.b16 %v384
    %v723 = vunpack.c.l.b16 %v385
    %v724 = vunpack.c.h.b16 %v385
    %v725 = vunpack.c.l.b16 %v386
    %v726 = vunpack.c.h.b16 %v386
    %v727 = vunpack.c.l.b16 %v387
    %v728 = vunpack.c.h.b16 %v387
    %v729 = vunpack.c.l.b16 %v388
    %v730 = vunpack.c.h.b16 %v388
    %v731 = vunpack.c.l.b16 %v389
    %v732 = vunpack.c.h.b16 %v389
    %v733 = vunpack.c.l.b16 %v390
    %v734 = vunpack.c.h.b16 %v390
    %v735 = vunpack.c.l.b16 %v391
    %v736 = vunpack.c.h.b16 %v391
    %v737 = vunpack.c.l.b16 %v392
    %v738 = vunpack.c.h.b16 %v392
    %v739 = vunpack.c.l.b16 %v393
    %v740 = vunpack.c.h.b16 %v393
    %v741 = vunpack.c.l.b16 %v394
    %v742 = vunpack.c.h.b16 %v394
    %v743 = vunpack.c.l.b16 %v395
    %v744 = vunpack.c.h.b16 %v395
    %v745 = vunpack.c.l.b16 %v396
    %v746 = vunpack.c.h.b16 %v396
    %v747 = vunpack.c.l.b16 %v397
    %v748 = vunpack.c.h.b16 %v397
    %v749 = vunpack.c.l.b16 %v398
    %v750 = vunpack.c.h.b16 %v398
    %v751 = vunpack.c.l.b16 %v399
    %v752 = vunpack.c.h.b16 %v399
    %v753 = vunpack.c.l.b16 %v400
    %v754 = vunpack.c.h.b16 %v400
    %v755 = vunpack.c.l.b16 %v401
    %v756 = vunpack.c.h.b16 %v401
    %v757 = vunpack.c.l.b16 %v402
    %v758 = vunpack.c.h.b16 %v402
    %v759 = vunpack.c.l.b16 %v403
    %v760 = vunpack.c.h.b16 %v403
    %v761 = vunpack.c.l.b16 %v404
    %v762 = vunpack.c.h.b16 %v404
    %v763 = vunpack.c.l.b16 %v405
    %v764 = vunpack.c.h.b16 %v405
    %v765 = vunpack.c.l.b16 %v406
    %v766 = vunpack.c.h.b16 %v406
    %v767 = vunpack.c.l.b16 %v407
    %v768 = vunpack.c.h.b16 %v407
    %v769 = vunpack.c.l.b16 %v408
    %v770 = vunpack.c.h.b16 %v408
    %v771 = vunpack.c.l.b16 %v409
    %v772 = vunpack.c.h.b16 %v409
    %v773 = vunpack.c.l.b16 %v410
    %v774 = vunpack.c.h.b16 %v410
    %v775 = vunpack.c.l.b16 %v411
    %v776 = vunpack.c.h.b16 %v411
    %v777 = vunpack.c.l.b16 %v412
    %v778 = vunpack.c.h.b16 %v412
    %v779 = vunpack.c.l.b16 %v413
    %v780 = vunpack.c.h.b16 %v413
    %v781 = vunpack.c.l.b16 %v414
    %v782 = vunpack.c.h.b16 %v414
    %v783 = vunpack.c.l.b16 %v415
    %v784 = vunpack.c.h.b16 %v415
    %v785 = vunpack.c.l.b16 %v416
    %v786 = vunpack.c.h.b16 %v416
    %v787 = vunpack.c.l.b16 %v417
    %v788 = vunpack.c.h.b16 %v417
    %v789 = vunpack.c.l.b16 %v418
    %v790 = vunpack.c.h.b16 %v418
    %v791 = vunpack.c.l.b16 %v419
    %v792 = vunpack.c.h.b16 %v419
    %v793 = vunpack.c.l.b16 %v420
    %v794 = vunpack.c.h.b16 %v420
    %v795 = vunpack.c.l.b16 %v421
    %v796 = vunpack.c.h.b16 %v421
    %v797 = vunpack.c.l.b16 %v422
    %v798 = vunpack.c.h.b16 %v422
    %v799 = vunpack.c.l.b16 %v423
    %v800 = vunpack.c.h.b16 %v423
    %v801 = vunpack.c.l.b16 %v424
    %v802 = vunpack.c.h.b16 %v424
    %v803 = vunpack.c.l.b16 %v425
    %v804 = vunpack.c.h.b16 %v425
    %v805 = vunpack.c.l.b16 %v426
    %v806 = vunpack.c.h.b16 %v426
    %v807 = vunpack.c.l.b16 %v427
    %v808 = vunpack.c.h.b16 %v427
    %v809 = vunpack.c.l.b16 %v428
    %v810 = vunpack.c.h.b16 %v428
    %v811 = vunpack.c.l.b16 %v429
    %v812 = vunpack.c.h.b16 %v429
    %v813 = vunpack.c.l.b16 %v430
    %v814 = vunpack.c.h.b16 %v430
    %v815 = vunpack.c.l.b16 %v431
    %v816 = vunpack.c.h.b16 %v431
    %v817 = vunpack.c.l.b16 %v432
    %v818 = vunpack.c.h.b16 %v432
    %v819 = vunpack.c.l.b16 %v433
    %v820 = vunpack.c.h.b16 %v433
    %v821 = vunpack.c.l.b16 %v434
    %v822 = vunpack.c.h.b16 %v434
    %v823 = vunpack.c.l.b16 %v435
    %v824 = vunpack.c.h.b16 %v435
    %v825 = vunpack.c.l.b16 %v436
    %v826 = vunpack.c.h.b16 %v436
    %v827 = vunpack.c.l.b16 %v437
    %v828 = vunpack.c.h.b16 %v437
    %v829 = vunpack.c.l.b16 %v438
    %v830 = vunpack.c.h.b16 %v438
    %v831 = vunpack.c.l.b16 %v439
    %v832 = vunpack.c.h.b16 %v439
    %v833 = vunpack.c.l.b16 %v440
    %v834 = vunpack.c.h.b16 %v440
    %v835 = vunpack.c.l.b16 %v441
    %v836 = vunpack.c.h.b16 %v441
    %v837 = vunpack.c.l.b16 %v442
    %v838 = vunpack.c.h.b16 %v442
    %v839 = vunpack.c.l.b16 %v443
    %v840 = vunpack.c.h.b16 %v443
    %v841 = vunpack.c.l.b16 %v444
    %v842 = vunpack.c.h.b16 %v444
    %v843 = vunpack.c.l.b16 %v445
    %v844 = vunpack.c.h.b16 %v445
    %v845 = vunpack.c.l.b16 %v446
    %v846 = vunpack.c.h.b16 %v446
    %v847 = vunpack.c.l.b16 %v447
    %v848 = vunpack.c.h.b16 %v447
    %v849 = vunpack.c.l.b16 %v448
    %v850 = vunpack.c.h.b16 %v448
    %v851 = vunpack.c.l.b16 %v449
    %v852 = vunpack.c.h.b16 %v449
    %v853 = vunpack.c.l.b16 %v450
    %v854 = vunpack.c.h.b16 %v450
    %v855 = vunpack.c.l.b16 %v451
    %v856 = vunpack.c.h.b16 %v451
    %v857 = vunpack.c.l.b16 %v452
    %v858 = vunpack.c.h.b16 %v452
    %v859 = vpack.c.b16 %v607, %v603
    %v860 = vpack.c.b16 %v608, %v604
    %v861 = vpack.c.b16 %v609, %v605
    %v862 = vpack.c.b16 %v610, %v606
    %v863 = vpack.c.b16 %v615, %v611
    %v864 = vpack.c.b16 %v616, %v612
    %v865 = vpack.c.b16 %v617, %v613
    %v866 = vpack.c.b16 %v618, %v614
    %v867 = vpack.c.b16 %v623, %v619
    %v868 = vpack.c.b16 %v624, %v620
    %v869 = vpack.c.b16 %v625, %v621
    %v870 = vpack.c.b16 %v626, %v622
    %v871 = vpack.c.b16 %v631, %v627
    %v872 = vpack.c.b16 %v632, %v628
    %v873 = vpack.c.b16 %v633, %v629
    %v874 = vpack.c.b16 %v634, %v630
    %v875 = vpack.c.b16 %v639, %v635
    %v876 = vpack.c.b16 %v640, %v636
    %v877 = vpack.c.b16 %v641, %v637
    %v878 = vpack.c.b16 %v642, %v638
    %v879 = vpack.c.b16 %v647, %v643
    %v880 = vpack.c.b16 %v648, %v644
    %v881 = vpack.c.b16 %v649, %v645
    %v882 = vpack.c.b16 %v650, %v646
    %v883 = vpack.c.b16 %v655, %v651
    %v884 = vpack.c.b16 %v656, %v652
    %v885 = vpack.c.b16 %v657, %v653
    %v886 = vpack.c.b16 %v658, %v654
    %v887 = vpack.c.b16 %v663, %v659
    %v888 = vpack.c.b16 %v664, %v660
    %v889 = vpack.c.b16 %v665, %v661
    %v890 = vpack.c.b16 %v666, %v662
    %v891 = vpack.c.b16 %v671, %v667
    %v892 = vpack.c.b16 %v672, %v668
    %v893 = vpack.c.b16 %v673, %v669
    %v894 = vpack.c.b16 %v674, %v670
    %v895 = vpack.c.b16 %v679, %v675
    %v896 = vpack.c.b16 %v680, %v676
    %v897 = vpack.c.b16 %v681, %v677
    %v898 = vpack.c.b16 %v682, %v678
    %v899 = vpack.c.b16 %v687, %v683
    %v900 = vpack.c.b16 %v688, %v684
    %v901 = vpack.c.b16 %v689, %v685
    %v902 = vpack.c.b16 %v690, %v686
    %v903 = vpack.c.b16 %v695, %v691
    %v904 = vpack.c.b16 %v696, %v692
    %v905 = vpack.c.b16 %v697, %v693
    %v906 = vpack.c.b16 %v698, %v694
    %v907 = vpack.c.b16 %v703, %v699
    %v908 = vpack.c.b16 %v704, %v700
    %v909 = vpack.c.b16 %v705, %v701
    %v910 = vpack.c.b16 %v706, %v702
    %v911 = vpack.c.b16 %v711, %v707
    %v912 = vpack.c.b16 %v712, %v708
    %v913 = vpack.c.b16 %v713, %v709
    %v914 = vpack.c.b16 %v714, %v710
    %v915 = vpack.c.b16 %v719, %v715
    %v916 = vpack.c.b16 %v720, %v716
    %v917 = vpack.c.b16 %v721, %v717
    %v918 = vpack.c.b16 %v722, %v718
    %v919 = vpack.c.b16 %v727, %v723
    %v920 = vpack.c.b16 %v728, %v724
    %v921 = vpack.c.b16 %v729, %v725
    %v922 = vpack.c.b16 %v730, %v726
    %v923 = vpack.c.b16 %v735, %v731
    %v924 = vpack.c.b16 %v736, %v732
    %v925 = vpack.c.b16 %v737, %v733
    %v926 = vpack.c.b16 %v738, %v734
    %v927 = vpack.c.b16 %v743, %v739
    %v928 = vpack.c.b16 %v744, %v740
    %v929 = vpack.c.b16 %v745, %v741
    %v930 = vpack.c.b16 %v746, %v742
    %v931 = vpack.c.b16 %v751, %v747
    %v932 = vpack.c.b16 %v752, %v748
    %v933 = vpack.c.b16 %v753, %v749
    %v934 = vpack.c.b16 %v754, %v750
    %v935 = vpack.c.b16 %v759, %v755
    %v936 = vpack.c.b16 %v760, %v756
    %v937 = vpack.c.b16 %v761, %v757
    %v938 = vpack.c.b16 %v762, %v758
    %v939 = vpack.c.b16 %v767, %v763
    %v940 = vpack.c.b16 %v768, %v764
    %v941 = vpack.c.b16 %v769, %v765
    %v942 = vpack.c.b16 %v770, %v766
    %v943 = vpack.c.b16 %v775, %v771
    %v944 = vpack.c.b16 %v776, %v772
    %v945 = vpack.c.b16 %v777, %v773
    %v946 = vpack.c.b16 %v778, %v774
    %v947 = vpack.c.b16 %v783, %v779
    %v948 = vpack.c.b16 %v784, %v780
    %v949 = vpack.c.b16 %v785, %v781
    %v950 = vpack.c.b16 %v786, %v782
    %v951 = vpack.c.b16 %v791, %v787
    %v952 = vpack.c.b16 %v792, %v788
    %v953 = vpack.c.b16 %v793, %v789
    %v954 = vpack.c.b16 %v794, %v790
    %v955 = vpack.c.b16 %v799, %v795
    %v956 = vpack.c.b16 %v800, %v796
    %v957 = vpack.c.b16 %v801, %v797
    %v958 = vpack.c.b16 %v802, %v798
    %v959 = vpack.c.b16 %v807, %v803
    %v960 = vpack.c.b16 %v808, %v804
    %v961 = vpack.c.b16 %v809, %v805
    %v962 = vpack.c.b16 %v810, %v806
    %v963 = vpack.c.b16 %v815, %v811
    %v964 = vpack.c.b16 %v816, %v812
    %v965 = vpack.c.b16 %v817, %v813
    %v966 = vpack.c.b16 %v818, %v814
    %v967 = vpack.c.b16 %v823, %v819
    %v968 = vpack.c.b16 %v824, %v820
    %v969 = vpack.c.b16 %v825, %v821
    %v970 = vpack.c.b16 %v826, %v822
    %v971 = vpack.c.b16 %v831, %v827
    %v972 = vpack.c.b16 %v832, %v828
    %v973 = vpack.c.b16 %v833, %v829
    %v974 = vpack.c.b16 %v834, %v830
    %v975 = vpack.c.b16 %v839, %v835
    %v976 = vpack.c.b16 %v840, %v836
    %v977 = vpack.c.b16 %v841, %v837
    %v978 = vpack.c.b16 %v842, %v838
    %v979 = vpack.c.b16 %v847, %v843
    %v980 = vpack.c.b16 %v848, %v844
    %v981 = vpack.c.b16 %v849, %v845
    %v982 = vpack.c.b16 %v850, %v846
    %v983 = vpack.c.b16 %v855, %v851
    %v984 = vpack.c.b16 %v856, %v852
    %v985 = vpack.c.b16 %v857, %v853
    %v986 = vpack.c.b16 %v858, %v854
    %1115 = vmatprep.subr.bf16.mxu0 %v888
    %1116 = vmatpush1.bf16.msra.mxu0 %v887
    %1117 = vmatprep.subr.bf16.mxu0 %v884
    %1118 = vmatpush1.bf16.msra.mxu0 %v883
    %1119 = vmatprep.subr.bf16.mxu0 %v880
    %1120 = vmatpush1.bf16.msra.mxu0 %v879
    %1121 = vmatprep.subr.bf16.mxu0 %v876
    %1122 = vmatpush1.bf16.msra.mxu0 %v875
    %1123 = vmatprep.subr.bf16.mxu0 %v872
    %1124 = vmatpush1.bf16.msra.mxu0 %v871
    %1125 = vmatprep.subr.bf16.mxu0 %v868
    %1126 = vmatpush1.bf16.msra.mxu0 %v867
    %1127 = vmatprep.subr.bf16.mxu0 %v864
    %1128 = vmatpush1.bf16.msra.mxu0 %v863
    %1129 = vmatprep.subr.bf16.mxu0 %v860
    %1130 = vmatpush1.bf16.msra.mxu0 %v859
    %1131 = vmatprep.subr.bf16.mxu0 %v920
    %1132 = vmatpush2.bf16.msra.mxu0 %v919
    %1133 = vmatprep.subr.bf16.mxu0 %v916
    %1134 = vmatpush2.bf16.msra.mxu0 %v915
    %1135 = vmatprep.subr.bf16.mxu0 %v912
    %1136 = vmatpush2.bf16.msra.mxu0 %v911
    %1137 = vmatprep.subr.bf16.mxu0 %v908
    %1138 = vmatpush2.bf16.msra.mxu0 %v907
    %1139 = vmatprep.subr.bf16.mxu0 %v904
    %1140 = vmatpush2.bf16.msra.mxu0 %v903
    %1141 = vmatprep.subr.bf16.mxu0 %v900
    %1142 = vmatpush2.bf16.msra.mxu0 %v899
    %1143 = vmatprep.subr.bf16.mxu0 %v896
    %1144 = vmatpush2.bf16.msra.mxu0 %v895
    %1145 = vmatprep.subr.bf16.mxu0 %v892
    %1146 = vmatpush2.bf16.msra.mxu0 %v891
    %1147 = vmatprep.mubr.bf16.mxu0 %v322
    %1148 = vmatmul.mubr.bf16.gmra.mxu0 %v321
    %v1149 = vpop.f32.mrf.mxu0
    %v1150 = vadd.f32 %v458, %v1149
    %v1151 = vpop.f32.mrf.mxu0
    %v1152 = vadd.f32 %v462, %v1151
    %v1153 = vpop.f32.mrf.mxu0
    %v1154 = vadd.f32 %v458, %v1153
    %v1155 = vpop.f32.mrf.mxu0
    %v1156 = vadd.f32 %v462, %v1155
    %1157 = vdwg.mxu0
    %1158 = vmatprep.subr.bf16.mxu0 %v952
    %1159 = vmatpush1.bf16.msra.mxu0 %v951
    %1160 = vmatprep.subr.bf16.mxu0 %v948
    %1161 = vmatpush1.bf16.msra.mxu0 %v947
    %1162 = vmatprep.subr.bf16.mxu0 %v944
    %1163 = vmatpush1.bf16.msra.mxu0 %v943
    %1164 = vmatprep.subr.bf16.mxu0 %v940
    %1165 = vmatpush1.bf16.msra.mxu0 %v939
    %1166 = vmatprep.subr.bf16.mxu0 %v936
    %1167 = vmatpush1.bf16.msra.mxu0 %v935
    %1168 = vmatprep.subr.bf16.mxu0 %v932
    %1169 = vmatpush1.bf16.msra.mxu0 %v931
    %1170 = vmatprep.subr.bf16.mxu0 %v928
    %1171 = vmatpush1.bf16.msra.mxu0 %v927
    %1172 = vmatprep.subr.bf16.mxu0 %v924
    %1173 = vmatpush1.bf16.msra.mxu0 %v923
    %1174 = vmatprep.subr.bf16.mxu0 %v984
    %1175 = vmatpush2.bf16.msra.mxu0 %v983
    %1176 = vmatprep.subr.bf16.mxu0 %v980
    %1177 = vmatpush2.bf16.msra.mxu0 %v979
    %1178 = vmatprep.subr.bf16.mxu0 %v976
    %1179 = vmatpush2.bf16.msra.mxu0 %v975
    %1180 = vmatprep.subr.bf16.mxu0 %v972
    %1181 = vmatpush2.bf16.msra.mxu0 %v971
    %1182 = vmatprep.subr.bf16.mxu0 %v968
    %1183 = vmatpush2.bf16.msra.mxu0 %v967
    %1184 = vmatprep.subr.bf16.mxu0 %v964
    %1185 = vmatpush2.bf16.msra.mxu0 %v963
    %1186 = vmatprep.subr.bf16.mxu0 %v960
    %1187 = vmatpush2.bf16.msra.mxu0 %v959
    %1188 = vmatprep.subr.bf16.mxu0 %v956
    %1189 = vmatpush2.bf16.msra.mxu0 %v955
    %1190 = vmatprep.mubr.bf16.mxu0 %v324
    %1191 = vmatmul.mubr.bf16.gmra.mxu0 %v323
    %v1192 = vpop.f32.mrf.mxu0
    %v1193 = vadd.f32 %v1150, %v1192
    %v1194 = vpop.f32.mrf.mxu0
    %v1195 = vadd.f32 %v1152, %v1194
    %v1196 = vpop.f32.mrf.mxu0
    %v1197 = vadd.f32 %v1154, %v1196
    %v1198 = vpop.f32.mrf.mxu0
    %v1199 = vadd.f32 %v1156, %v1198
    %1200 = vdwg.mxu0
    %1201 = vmatprep.subr.bf16.mxu0 %v890
    %1202 = vmatpush1.bf16.msra.mxu0 %v889
    %1203 = vmatprep.subr.bf16.mxu0 %v886
    %1204 = vmatpush1.bf16.msra.mxu0 %v885
    %1205 = vmatprep.subr.bf16.mxu0 %v882
    %1206 = vmatpush1.bf16.msra.mxu0 %v881
    %1207 = vmatprep.subr.bf16.mxu0 %v878
    %1208 = vmatpush1.bf16.msra.mxu0 %v877
    %1209 = vmatprep.subr.bf16.mxu0 %v874
    %1210 = vmatpush1.bf16.msra.mxu0 %v873
    %1211 = vmatprep.subr.bf16.mxu0 %v870
    %1212 = vmatpush1.bf16.msra.mxu0 %v869
    %1213 = vmatprep.subr.bf16.mxu0 %v866
    %1214 = vmatpush1.bf16.msra.mxu0 %v865
    %1215 = vmatprep.subr.bf16.mxu0 %v862
    %1216 = vmatpush1.bf16.msra.mxu0 %v861
    %1217 = vmatprep.subr.bf16.mxu0 %v922
    %1218 = vmatpush2.bf16.msra.mxu0 %v921
    %1219 = vmatprep.subr.bf16.mxu0 %v918
    %1220 = vmatpush2.bf16.msra.mxu0 %v917
    %1221 = vmatprep.subr.bf16.mxu0 %v914
    %1222 = vmatpush2.bf16.msra.mxu0 %v913
    %1223 = vmatprep.subr.bf16.mxu0 %v910
    %1224 = vmatpush2.bf16.msra.mxu0 %v909
    %1225 = vmatprep.subr.bf16.mxu0 %v906
    %1226 = vmatpush2.bf16.msra.mxu0 %v905
    %1227 = vmatprep.subr.bf16.mxu0 %v902
    %1228 = vmatpush2.bf16.msra.mxu0 %v901
    %1229 = vmatprep.subr.bf16.mxu0 %v898
    %1230 = vmatpush2.bf16.msra.mxu0 %v897
    %1231 = vmatprep.subr.bf16.mxu0 %v894
    %1232 = vmatpush2.bf16.msra.mxu0 %v893
    %1233 = vmatprep.mubr.bf16.mxu0 %v322
    %1234 = vmatmul.mubr.bf16.gmra.mxu0 %v321
    %v1235 = vpop.f32.mrf.mxu0
    %v1236 = vadd.f32 %v466, %v1235
    %v1237 = vpop.f32.mrf.mxu0
    %v1238 = vadd.f32 %v470, %v1237
    %v1239 = vpop.f32.mrf.mxu0
    %v1240 = vadd.f32 %v466, %v1239
    %v1241 = vpop.f32.mrf.mxu0
    %v1242 = vadd.f32 %v470, %v1241
    %1243 = vdwg.mxu0
    %1244 = vmatprep.subr.bf16.mxu0 %v954
    %1245 = vmatpush1.bf16.msra.mxu0 %v953
    %1246 = vmatprep.subr.bf16.mxu0 %v950
    %1247 = vmatpush1.bf16.msra.mxu0 %v949
    %1248 = vmatprep.subr.bf16.mxu0 %v946
    %1249 = vmatpush1.bf16.msra.mxu0 %v945
    %1250 = vmatprep.subr.bf16.mxu0 %v942
    %1251 = vmatpush1.bf16.msra.mxu0 %v941
    %1252 = vmatprep.subr.bf16.mxu0 %v938
    %1253 = vmatpush1.bf16.msra.mxu0 %v937
    %1254 = vmatprep.subr.bf16.mxu0 %v934
    %1255 = vmatpush1.bf16.msra.mxu0 %v933
    %1256 = vmatprep.subr.bf16.mxu0 %v930
    %1257 = vmatpush1.bf16.msra.mxu0 %v929
    %1258 = vmatprep.subr.bf16.mxu0 %v926
    %1259 = vmatpush1.bf16.msra.mxu0 %v925
    %1260 = vmatprep.subr.bf16.mxu0 %v986
    %1261 = vmatpush2.bf16.msra.mxu0 %v985
    %1262 = vmatprep.subr.bf16.mxu0 %v982
    %1263 = vmatpush2.bf16.msra.mxu0 %v981
    %1264 = vmatprep.subr.bf16.mxu0 %v978
    %1265 = vmatpush2.bf16.msra.mxu0 %v977
    %1266 = vmatprep.subr.bf16.mxu0 %v974
    %1267 = vmatpush2.bf16.msra.mxu0 %v973
    %1268 = vmatprep.subr.bf16.mxu0 %v970
    %1269 = vmatpush2.bf16.msra.mxu0 %v969
    %1270 = vmatprep.subr.bf16.mxu0 %v966
    %1271 = vmatpush2.bf16.msra.mxu0 %v965
    %1272 = vmatprep.subr.bf16.mxu0 %v962
    %1273 = vmatpush2.bf16.msra.mxu0 %v961
    %1274 = vmatprep.subr.bf16.mxu0 %v958
    %1275 = vmatpush2.bf16.msra.mxu0 %v957
    %1276 = vmatprep.mubr.bf16.mxu0 %v324
    %1277 = vmatmul.mubr.bf16.gmra.mxu0 %v323
    %v1278 = vpop.f32.mrf.mxu0
    %v1279 = vadd.f32 %v1236, %v1278
    %v1280 = vpop.f32.mrf.mxu0
    %v1281 = vadd.f32 %v1238, %v1280
    %v1282 = vpop.f32.mrf.mxu0
    %v1283 = vadd.f32 %v1240, %v1282
    %v1284 = vpop.f32.mrf.mxu0
    %v1285 = vadd.f32 %v1242, %v1284
    %1286 = vdwg.mxu0
    %v1287 = vmax.f32 %v1193, 0.0
    %v1288 = vmax.f32 %v1195, 0.0
    %v1289 = vmax.f32 %v1279, 0.0
    %v1290 = vmax.f32 %v1281, 0.0
    %v1291 = vmax.f32 %v1197, 0.0
    %v1292 = vmax.f32 %v1199, 0.0
    %v1293 = vmax.f32 %v1283, 0.0
    %v1294 = vmax.f32 %v1285, 0.0
    %1295 = vst [vmem:[#allocation10] sm:$0xff] %v1287
    %1296 = vst [vmem:[#allocation10 + $0x8] sm:$0xff] %v1288
    %1297 = vst [vmem:[#allocation10 + $0x10] sm:$0xff] %v1289
    %1298 = vst [vmem:[#allocation10 + $0x18] sm:$0xff] %v1290
    %1299 = vst [vmem:[#allocation10 + $0x20] sm:$0xff] %v1291
    %1300 = vst [vmem:[#allocation10 + $0x28] sm:$0xff] %v1292
    %1301 = vst [vmem:[#allocation10 + $0x30] sm:$0xff] %v1293
    %1302 = vst [vmem:[#allocation10 + $0x38] sm:$0xff] %v1294
    // Predicated region
    $region38: #{torso_forward.1} parent=1 // pred_check
      _
    $region39: #{torso_forward.1} parent=1 // pred_check_branch
      %1304 = sbr.rel (0) target = $region41
    $region40: #{torso_forward.1} parent=1 // pred_region
      %s1306 = ssub.s32 1024, 1024
      %1307 = vsyncadd [#allocation4], %s1306
      %s1308 = sshll.u32 [#allocation10], 4
      %s1309 = int_to_ptr.vmem [resolvable:$true] %s1308
      %1314 = dma.vmem_to_hbm [thread:$0]  %s1309, 1024, %s5, [#allocation4], 512, 512, 32
    $region41: #{torso_forward.1} parent=1 // pred_fallthru
      _
    // Predicated region
    $region42: #{torso_forward.1} parent=1 // pred_check
      _
    $region43: #{torso_forward.1} parent=1 // pred_check_branch
      %1316 = sbr.rel (0) target = $region45
    $region44: #{torso_forward.1} parent=1 // pred_region
      %1317 = dma.done [#allocation4], 1024
    $region45: #{torso_forward.1} parent=1 // pred_fallthru
      _
    %1318 = vsyncpa [#allocation3], 1
    %1319 = vsyncpa [#allocation6], 1
    %1320 = vsyncpa [#allocation9], 1
    %1321 = vsyncpa [#allocation4], 1

</llo_original>
